<compile_context>
chip_gen: v5e
topology: v5e:2x2
jax: 0.10.0
libtpu: 0.0.40
codegen_flags: <defaults>
</compile_context>

<pallas_src>
import jax
import jax.numpy as jnp
from jax import lax
from jax.experimental import pallas as pl
from jax.experimental.pallas import tpu as pltpu


# ----------------------------------------------------------------------------
# Pallas kernel: channel max/mean -> 7x7 conv (as MXU matmul) -> bias -> sigmoid
# ----------------------------------------------------------------------------
def _spatial_attention_kernel(x_ref, convmat_ref, bias_ref, o_ref):
    # x_ref       : (1, C, H*W)   f32, one batch element, lane-dense spatial axis
    # convmat_ref : (2*H*W, H*W)  f32, lowered conv matrix (zero padding folded in)
    # bias_ref    : (1, 1)        f32, SMEM scalar (conv bias)
    # o_ref       : (1, 1, H*W)   f32
    x = x_ref[0]                                   # (C, HW)
    mx = jnp.max(x, axis=0, keepdims=True)         # (1, HW)  channel max
    av = jnp.mean(x, axis=0, keepdims=True)        # (1, HW)  channel mean
    feat = jnp.concatenate([mx, av], axis=-1)      # (1, 2*HW) == cat([max, avg], 1)

    # Entire 7x7 conv as one MXU matmul (K = 2*H*W, output lane-dense H*W).
    y = jnp.dot(feat, convmat_ref[...], preferred_element_type=jnp.float32)
    y = y + bias_ref[0, 0]
    y = 1.0 / (1.0 + jnp.exp(-y))                  # sigmoid (EUP exp)
    o_ref[...] = y.reshape(o_ref.shape)


# ----------------------------------------------------------------------------
# Weight preprocessing (outside the kernel): conv -> dense matrix
# ----------------------------------------------------------------------------
def _build_lowered_conv_matrix(w, H, W):
    """Expand Conv2d(C, 1, k, padding=k//2) weights into a (C*H*W, H*W) matrix.

    B[(c, yi, xi), (yo, xo)] = w[0, c, yi - yo + p, xi - xo + p]  (0 if out of
    the kxk window), so  out_flat = feat_flat @ B  reproduces PyTorch's padded
    cross-correlation exactly (zero padding is implicit in the masking).
    """
    _, C, kh, kw = w.shape
    p = kh // 2
    HW = H * W
    yi = jnp.arange(H)[:, None, None, None]
    xi = jnp.arange(W)[None, :, None, None]
    yo = jnp.arange(H)[None, None, :, None]
    xo = jnp.arange(W)[None, None, None, :]
    di = yi - yo + p                               # (H, W, H, W)
    dj = xi - xo + p
    valid = (di >= 0) & (di < kh) & (dj >= 0) & (dj < kw)
    dic = jnp.clip(di, 0, kh - 1)
    djc = jnp.clip(dj, 0, kw - 1)
    blocks = []
    for c in range(C):
        taps = w[0, c][dic, djc]                   # (H, W, H, W)
        blocks.append(jnp.where(valid, taps, 0.0).reshape(HW, HW))
    return jnp.concatenate(blocks, axis=0).astype(jnp.float32)   # (C*HW, HW)


# ----------------------------------------------------------------------------
# Wrapper
# ----------------------------------------------------------------------------
def spatial_attention(x_nchw, conv_w, conv_b):
    """x: (N, C, H, W) f32 -> (N, 1, H, W) f32, matching PyTorch SpatialAttention."""
    N, C, H, W = x_nchw.shape
    HW = H * W
    x_flat = x_nchw.reshape(N, C, HW).astype(jnp.float32)
    convmat = _build_lowered_conv_matrix(conv_w.astype(jnp.float32), H, W)
    bias = jnp.reshape(conv_b, (1, 1)).astype(jnp.float32)

    out = pl.pallas_call(
        _spatial_attention_kernel,
        out_shape=jax.ShapeDtypeStruct((N, 1, HW), jnp.float32),
        grid=(N,),
        in_specs=[
            pl.BlockSpec((1, C, HW), lambda n: (n, 0, 0)),
            pl.BlockSpec((2 * HW, HW), lambda n: (0, 0)),        # VMEM-resident weights
            pl.BlockSpec(memory_space=pltpu.MemorySpace.SMEM),   # scalar conv bias
        ],
        out_specs=pl.BlockSpec((1, 1, HW), lambda n: (n, 0, 0)),
        compiler_params=pltpu.CompilerParams(
            dimension_semantics=("parallel",)),                  # v7x: shard batch over 2 TCs
    )(x_flat, convmat, bias)
    return out.reshape(N, 1, H, W)


# ----------------------------------------------------------------------------
# Pure-JAX reference (for correctness check)
# ----------------------------------------------------------------------------
def spatial_attention_ref(x, conv_w, conv_b):
    mx = jnp.max(x, axis=1, keepdims=True)
    av = jnp.mean(x, axis=1, keepdims=True)
    r = jnp.concatenate([mx, av], axis=1)                        # (N, 2, H, W)
    y = lax.conv_general_dilated(
        r, conv_w, window_strides=(1, 1), padding=((3, 3), (3, 3)),
        dimension_numbers=("NCHW", "OIHW", "NCHW"),
        precision=lax.Precision.HIGHEST)
    return 1.0 / (1.0 + jnp.exp(-(y + conv_b.reshape(1, -1, 1, 1))))


# ----------------------------------------------------------------------------
if __name__ == "__main__":
    N, C, H, W = 2, 4, 16, 16

    key = jax.random.PRNGKey(0)
    kx, kw, kb = jax.random.split(key, 3)

    x = jax.random.normal(kx, (N, C, H, W), jnp.float32)
    conv_w = jax.random.normal(kw, (1, 2, 7, 7), jnp.float32) * (1.0 / (2 * 49) ** 0.5)
    conv_b = jax.random.normal(kb, (1,), jnp.float32) * 0.1

    out = spatial_attention(x, conv_w, conv_b)
    jax.block_until_ready(out)

    assert out.shape == (N, 1, H, W), out.shape
    assert bool(jnp.all(jnp.isfinite(out)))

    ref = spatial_attention_ref(x, conv_w, conv_b)
    max_err = float(jnp.max(jnp.abs(out - ref)))
    assert max_err < 2e-2, f"mismatch vs reference, max_err={max_err}"

    print("KERNEL_OK")
</pallas_src>

<mosaic_0001>
module attributes {stable_mosaic.version = 11 : i64} {
  func.func @_spatial_attention_kernel(%arg0: i32, %arg1: memref<1x4x256xf32, #tpu.memory_space<vmem>>, %arg2: memref<512x256xf32, #tpu.memory_space<vmem>>, %arg3: memref<1x1xf32, #tpu.memory_space<smem>>, %arg4: memref<1x1x256xf32, #tpu.memory_space<vmem>>) attributes {dimension_semantics = [#tpu.dimension_semantics<parallel>], iteration_bounds = array<i64: 2>, scalar_prefetch = 0 : i64, scratch_operands = 0 : i64, tpu.core_type = #tpu.core_type<tc>, window_params = [{transform_indices = @transform_0, window_bounds = array<i64: 1, 4, 256>}, {pipeline_mode = #tpu.pipeline_mode<synchronous>, transform_indices = @transform_1, window_bounds = array<i64: 512, 256>}, {transform_indices = @transform_2, window_bounds = array<i64: 1, 1>}, {transform_indices = @transform_3, window_bounds = array<i64: 1, 1, 256>}]} {
    %c0 = arith.constant 0 : index
    %c0_0 = arith.constant 0 : index
    %c0_1 = arith.constant 0 : index
    %0 = vector.load %arg1[%c0, %c0_0, %c0_1] : memref<1x4x256xf32, #tpu.memory_space<vmem>>, vector<1x4x256xf32>
    %1 = vector.shape_cast %0 : vector<1x4x256xf32> to vector<4x256xf32>
    %cst = arith.constant dense<0xFF800000> : vector<256xf32>
    %2 = vector.multi_reduction <maximumf>, %1, %cst [0] : vector<4x256xf32> to vector<256xf32>
    %3 = vector.shape_cast %2 : vector<256xf32> to vector<1x256xf32>
    %cst_2 = arith.constant dense<0.000000e+00> : vector<256xf32>
    %4 = vector.multi_reduction <add>, %1, %cst_2 [0] : vector<4x256xf32> to vector<256xf32>
    %5 = vector.shape_cast %4 : vector<256xf32> to vector<1x256xf32>
    %cst_3 = arith.constant 4.000000e+00 : f32
    %6 = vector.broadcast %cst_3 : f32 to vector<1x256xf32>
    %7 = arith.divf %5, %6 : vector<1x256xf32>
    %8 = tpu.concatenate %3, %7 in 1 : vector<1x256xf32>, vector<1x256xf32> -> vector<1x512xf32>
    %c0_4 = arith.constant 0 : index
    %c0_5 = arith.constant 0 : index
    %9 = vector.load %arg2[%c0_4, %c0_5] : memref<512x256xf32, #tpu.memory_space<vmem>>, vector<512x256xf32>
    %cst_6 = arith.constant dense<0.000000e+00> : vector<1x256xf32>
    %10 = tpu.matmul %8, %9, %cst_6 {dimension_numbers = #tpu.dot_dimension_numbers<[1], [0], [0], [1], [0, 0, 1, 1], [], []>} : vector<1x512xf32>, vector<512x256xf32>, vector<1x256xf32> -> vector<1x256xf32>
    %c0_7 = arith.constant 0 : index
    %c0_8 = arith.constant 0 : index
    %11 = memref.load %arg3[%c0_7, %c0_8] : memref<1x1xf32, #tpu.memory_space<smem>>
    %12 = vector.broadcast %11 : f32 to vector<1x256xf32>
    %13 = arith.addf %10, %12 : vector<1x256xf32>
    %cst_9 = arith.constant 0.000000e+00 : f32
    %14 = vector.broadcast %cst_9 : f32 to vector<1x256xf32>
    %15 = arith.subf %14, %13 : vector<1x256xf32>
    %16 = math.exp %15 : vector<1x256xf32>
    %cst_10 = arith.constant 1.000000e+00 : f32
    %17 = vector.broadcast %cst_10 : f32 to vector<1x256xf32>
    %18 = arith.addf %17, %16 : vector<1x256xf32>
    %cst_11 = arith.constant 1.000000e+00 : f32
    %19 = vector.broadcast %cst_11 : f32 to vector<1x256xf32>
    %20 = arith.divf %19, %18 : vector<1x256xf32>
    %21 = vector.shape_cast %20 : vector<1x256xf32> to vector<1x1x256xf32>
    %c0_12 = arith.constant 0 : index
    %c0_13 = arith.constant 0 : index
    %c0_14 = arith.constant 0 : index
    %22 = vector.load %arg4[%c0_12, %c0_13, %c0_14] : memref<1x1x256xf32, #tpu.memory_space<vmem>>, vector<1x1x256xf32>
    tpu.vector_store %arg4[%c0_12, %c0_13, %c0_14], %21 {strides = array<i32>} : memref<1x1x256xf32, #tpu.memory_space<vmem>>, vector<1x1x256xf32>,
    return
  }
  func.func @transform_0(%arg0: i32) -> (i32, i32, i32) {
    %c0_i32 = arith.constant 0 : i32
    %c0_i32_0 = arith.constant 0 : i32
    %c0_i32_1 = arith.constant 0 : i32
    return %arg0, %c0_i32, %c0_i32_0 : i32, i32, i32
  }
  func.func @transform_1(%arg0: i32) -> (i32, i32) {
    %c0_i32 = arith.constant 0 : i32
    %c0_i32_0 = arith.constant 0 : i32
    %c0_i32_1 = arith.constant 0 : i32
    return %c0_i32, %c0_i32_0 : i32, i32
  }
  func.func @transform_2(%arg0: i32) -> (i32, i32) {
    %c0_i32 = arith.constant 0 : i32
    %c0_i32_0 = arith.constant 0 : i32
    %c0_i32_1 = arith.constant 0 : i32
    return %c0_i32, %c0_i32_0 : i32, i32
  }
  func.func @transform_3(%arg0: i32) -> (i32, i32, i32) {
    %c0_i32 = arith.constant 0 : i32
    %c0_i32_0 = arith.constant 0 : i32
    %c0_i32_1 = arith.constant 0 : i32
    return %arg0, %c0_i32, %c0_i32_0 : i32, i32, i32
  }
}

</mosaic_0001>

<llo_original>
// kernel: tpu_custom_call.1
$region0: #{tpu_custom_call.1}
  #allocation0 [shape = 'u32[]', space=smem, size = 0x4, offset = 0x4, fixed_abs, tag = 'smem constant byte address 0x4 - core index']
  #allocation1 [shape = 'u32[72,128]{1,0:T(1,128)}', space=vmem, size = 0x9000, scoped, tag = 'internal scratch']
  #allocation2 [shape = 'f32[1,1]{1,0:T(1,128)S(6)}', space=smem, size = 0x200, scoped, tag = 'scoped memory for tpu_custom_call.1']
  %s0 = inlined_call_operand.hbm [shape: f32[2,4,256], index: 0, kind: input, shape index: {}]
  %s1 = inlined_call_operand.hbm [shape: f32[512,256], index: 1, kind: input, shape index: {}]
  %s2 = inlined_call_operand.<no memory space> [shape: f32[1,1], index: 2, kind: input, shape index: {}]
  %s3 = inlined_call_operand.hbm [shape: f32[2,1,256], index: 3, kind: output, shape index: {}]
  %s4 = sld [smem:[#allocation0]]
  $region53: #{tpu_custom_call.1} parent=0
    _
  %s6 = ssub.s32 1, %s4
  %s7 = scalar_select 0, %s6, %s4
  %8 = sst [smem:[#allocation2]] %s2
  $region1: #{tpu_custom_call.1} parent=0
    #allocation3 [shape = 'u8[8192]{0}', space=vmem, size = 0x2000, scoped, tag = 'input window, operand 0']
    #allocation4 [shape = 's32[2]{0}', space=sflag, size = 0x8, scoped, tag = 'scoped memory for tpu_custom_call.1']
    #allocation5 [shape = 's32[2]{0}', space=sflag, size = 0x8, scoped, tag = 'scoped memory for tpu_custom_call.1']
    #allocation6 [shape = 'u8[524288]{0}', space=vmem, size = 0x80000, scoped, tag = 'input window, operand 1, single buffered']
    #allocation7 [shape = 's32[1]{0}', space=sflag, size = 0x4, scoped, tag = 'scoped memory for tpu_custom_call.1']
    #allocation8 [shape = 'u8[2048]{0}', space=vmem, size = 0x800, scoped, tag = 'output window, operand 0']
    %9 = vsyncpa [#allocation4], 0
    %s10 = scalar_lea.sflag [#allocation4], 1
    %11 = vsyncpa %s10, 0
    %12 = vsyncpa [#allocation7], 0
    %13 = vsyncpa [#allocation5], 0
    %s14 = scalar_lea.sflag [#allocation5], 1
    %15 = vsyncpa %s14, 0
    loop: start=0, step=1, limit=4
    $region2: #{tpu_custom_call.1} parent=1 // loop_pre_header
      _
    $region3: #{tpu_custom_call.1} parent=1 // loop_header
      %s17 = sphi 0, %s21
      %p18 = scmp.ge.s32.totalorder %s17, 4
      %s27 = sphi 0, %s29
      %s30 = sphi 0, %s27
      %s31 = sphi 0, %s30
      %s47 = sphi 0, %s31
      %s51 = sphi 0, %s51
      %s53 = sphi 0, %s51
      %s54 = sphi 0, %s53
      %s68 = sphi 0, %s54
      %s72 = sphi 0, %s72
      %s74 = sphi 0, %s72
      %s75 = sphi 0, %s74
      %s89 = sphi 0, %s75
      %s95 = sphi 0, %s97
      %s98 = sphi 0, %s95
      %s99 = sphi 0, %s98
      %s115 = sphi 0, %s99
    $region4: #{tpu_custom_call.1} parent=1 // loop_header_branch
      %20 = sbr.rel (%p18) target = $region8
    $region5: #{tpu_custom_call.1} parent=1 // loop_body
      %s22 = ssub.s32 %s17, 1
      %s23 = ssub.s32 %s17, 2
      %s24 = sadd.s32 %s17, 1
      %s25 = ssub.s32 %s17, %s24
      %p26 = scmp.eq.s32.totalorder %s25, 0
      %s28 = sadd.s32 %s27, 1
      %s29 = scalar_select %p26, %s27, %s28
      %p32 = pneg %p26
      %p33 = scmp.eq.s32.totalorder %s17, 1
      %p34 = por %p32, %p33
      %p35 = scmp.ne.s32.totalorder %s27, %s30
      %p36 = scmp.eq.s32.totalorder %s17, 0
      %p37 = por %p35, %p36
      %p38 = scmp.ne.s32.totalorder %s27, %s30
      %p39 = scmp.eq.s32.totalorder %s22, 1
      %p40 = por %p38, %p39
      %p41 = scmp.ne.s32.totalorder %s30, %s31
      %p42 = scmp.eq.s32.totalorder %s22, 0
      %p43 = por %p41, %p42
      %p44 = scmp.ne.s32.totalorder %s30, %s31
      %p45 = scmp.eq.s32.totalorder %s23, 1
      %p46 = por %p44, %p45
      %p48 = scmp.ne.s32.totalorder %s31, %s47
      %p49 = scmp.eq.s32.totalorder %s23, 0
      %p50 = por %p48, %p49
      %s52 = sadd.s32 %s51, 1
      %p55 = scmp.eq.s32.totalorder %s17, 1
      %p56 = scmp.ne.s32.totalorder %s51, %s53
      %p57 = scmp.eq.s32.totalorder %s17, 0
      %p58 = por %p56, %p57
      %p59 = scmp.ne.s32.totalorder %s51, %s53
      %p60 = scmp.eq.s32.totalorder %s22, 1
      %p61 = por %p59, %p60
      %p62 = scmp.ne.s32.totalorder %s53, %s54
      %p63 = scmp.eq.s32.totalorder %s22, 0
      %p64 = por %p62, %p63
      %p65 = scmp.ne.s32.totalorder %s53, %s54
      %p66 = scmp.eq.s32.totalorder %s23, 1
      %p67 = por %p65, %p66
      %p69 = scmp.ne.s32.totalorder %s54, %s68
      %p70 = scmp.eq.s32.totalorder %s23, 0
      %p71 = por %p69, %p70
      %s73 = sadd.s32 %s72, 1
      %p76 = scmp.eq.s32.totalorder %s17, 1
      %p77 = scmp.ne.s32.totalorder %s72, %s74
      %p78 = scmp.eq.s32.totalorder %s17, 0
      %p79 = por %p77, %p78
      %p80 = scmp.ne.s32.totalorder %s72, %s74
      %p81 = scmp.eq.s32.totalorder %s22, 1
      %p82 = por %p80, %p81
      %p83 = scmp.ne.s32.totalorder %s74, %s75
      %p84 = scmp.eq.s32.totalorder %s22, 0
      %p85 = por %p83, %p84
      %p86 = scmp.ne.s32.totalorder %s74, %s75
      %p87 = scmp.eq.s32.totalorder %s23, 1
      %p88 = por %p86, %p87
      %p90 = scmp.ne.s32.totalorder %s75, %s89
      %p91 = scmp.eq.s32.totalorder %s23, 0
      %p92 = por %p90, %p91
      %s93 = ssub.s32 %s17, %s24
      %p94 = scmp.eq.s32.totalorder %s93, 0
      %s96 = sadd.s32 %s95, 1
      %s97 = scalar_select %p94, %s95, %s96
      %p100 = pneg %p94
      %p101 = scmp.eq.s32.totalorder %s17, 1
      %p102 = por %p100, %p101
      %p103 = scmp.ne.s32.totalorder %s95, %s98
      %p104 = scmp.eq.s32.totalorder %s17, 0
      %p105 = por %p103, %p104
      %p106 = scmp.ne.s32.totalorder %s95, %s98
      %p107 = scmp.eq.s32.totalorder %s22, 1
      %p108 = por %p106, %p107
      %p109 = scmp.ne.s32.totalorder %s98, %s99
      %p110 = scmp.eq.s32.totalorder %s22, 0
      %p111 = por %p109, %p110
      %p112 = scmp.ne.s32.totalorder %s98, %s99
      %p113 = scmp.eq.s32.totalorder %s23, 1
      %p114 = por %p112, %p113
      %p116 = scmp.ne.s32.totalorder %s99, %s115
      %p117 = scmp.eq.s32.totalorder %s23, 0
      %p118 = por %p116, %p117
      %p119 = scmp.le.s32.totalorder 1, %s17
      %p120 = scmp.lt.s32.totalorder %s17, 3
      %p121 = pnand %p119, %p120
      %p122 = pneg %p121
      // Predicated region
      $region9: #{tpu_custom_call.1} parent=5 // pred_check
        _
      $region10: #{tpu_custom_call.1} parent=5 // pred_check_branch
        %124 = sbr.rel (%p121) target = $region12
      $region11: #{tpu_custom_call.1} parent=5 // pred_region
        %s125 = ssub.s32 %s17, 1
        // Predicated region
        $region13: #{tpu_custom_call.1} parent=11 // pred_check
          %p126 = pneg %p64
        $region14: #{tpu_custom_call.1} parent=11 // pred_check_branch
          %128 = sbr.rel (%p126) target = $region16
        $region15: #{tpu_custom_call.1} parent=11 // pred_region
          %130 = vsyncadd [#allocation7], 0
          %s131 = sshll.u32 %s1, 4
          %s132 = int_to_ptr.hbm [resolvable:$true] %s131
          %s133 = sshll.u32 [#allocation6], 4
          %s134 = int_to_ptr.vmem [resolvable:$true] %s133
          %139 = dma.hbm_to_vmem [thread:$0]  %s132, 16384, %s134, [#allocation7], 256, 256, 16
        $region16: #{tpu_custom_call.1} parent=11 // pred_fallthru
          _
        // Predicated region
        $region17: #{tpu_custom_call.1} parent=11 // pred_check
          %p140 = pneg %p85
        $region18: #{tpu_custom_call.1} parent=11 // pred_check_branch
          %142 = sbr.rel (%p140) target = $region20
        $region19: #{tpu_custom_call.1} parent=11 // pred_region
          _
        $region20: #{tpu_custom_call.1} parent=11 // pred_fallthru
          _
      $region12: #{tpu_custom_call.1} parent=5 // pred_fallthru
        _
      %p143 = scmp.lt.s32.totalorder %s17, 2
      // Predicated region
      $region21: #{tpu_custom_call.1} parent=5 // pred_check
        %p144 = pneg %p143
      $region22: #{tpu_custom_call.1} parent=5 // pred_check_branch
        %146 = sbr.rel (%p144) target = $region24
      $region23: #{tpu_custom_call.1} parent=5 // pred_region
        // Predicated region
        $region25: #{tpu_custom_call.1} parent=23 // pred_check
          %p147 = pneg %p37
        $region26: #{tpu_custom_call.1} parent=23 // pred_check_branch
          %149 = sbr.rel (%p147) target = $region28
        $region27: #{tpu_custom_call.1} parent=23 // pred_region
          %s150 = sand.u32 %s27, 1
          %s151 = scalar_lea.sflag [#allocation4], %s150
          %s152 = sand.u32 %s27, 1
          %s153 = smul.addr %s152, 8
          %s154 = scalar_lea.vmem [#allocation3], %s153
          %156 = vsyncadd %s151, 0
          %s157 = smul.addr %s17, 2
          %s158 = smul.addr %s157, 4
          %s159 = scalar_lea.hbm %s0, %s158
          %s161 = sshll.u32 %s159, 4
          %s162 = int_to_ptr.hbm [resolvable:$true] %s161
          %s163 = sshll.u32 %s154, 4
          %s164 = int_to_ptr.vmem [resolvable:$true] %s163
          %166 = dma.hbm_to_vmem [thread:$0]  %s162, 128, %s164, %s151
        $region28: #{tpu_custom_call.1} parent=23 // pred_fallthru
          _
      $region24: #{tpu_custom_call.1} parent=5 // pred_fallthru
        _
      %p167 = scmp.le.s32.totalorder 1, %s17
      %p168 = scmp.lt.s32.totalorder %s17, 3
      %p169 = pnand %p167, %p168
      %p170 = pneg %p169
      // Predicated region
      $region29: #{tpu_custom_call.1} parent=5 // pred_check
        _
      $region30: #{tpu_custom_call.1} parent=5 // pred_check_branch
        %172 = sbr.rel (%p169) target = $region32
      $region31: #{tpu_custom_call.1} parent=5 // pred_region
        %s173 = ssub.s32 %s17, 1
        %s174 = sand.u32 %s30, 1
        %s175 = scalar_lea.sflag [#allocation4], %s174
        %s176 = sand.u32 %s30, 1
        %s177 = smul.addr %s176, 8
        %s178 = scalar_lea.vmem [#allocation3], %s177
        // Predicated region
        $region33: #{tpu_custom_call.1} parent=31 // pred_check
          %p179 = pneg %p43
        $region34: #{tpu_custom_call.1} parent=31 // pred_check_branch
          %181 = sbr.rel (%p179) target = $region36
        $region35: #{tpu_custom_call.1} parent=31 // pred_region
          %183 = dma.done %s175, 128
        $region36: #{tpu_custom_call.1} parent=31 // pred_fallthru
          _
        // Predicated region
        $region37: #{tpu_custom_call.1} parent=31 // pred_check
          %p184 = pneg %p64
        $region38: #{tpu_custom_call.1} parent=31 // pred_check_branch
          %186 = sbr.rel (%p184) target = $region40
        $region39: #{tpu_custom_call.1} parent=31 // pred_region
          %188 = dma.done [#allocation7], 16384
        $region40: #{tpu_custom_call.1} parent=31 // pred_fallthru
          _
        %s189 = sand.u32 %s30, 1
        %s190 = scalar_lea.sflag [#allocation4], %s189
        %s191 = sand.u32 %s30, 1
        %s192 = smul.addr %s191, 8
        %s193 = scalar_lea.vmem [#allocation3], %s192
        %p194 = pneg %p43
        %p195 = pneg %p40
        %p196 = pneg %p64
        %p197 = pneg %p61
        %p198 = pneg %p85
        %p199 = pneg %p82
        %p200 = pneg %p111
        %p201 = pneg %p108
        %s202 = sand.u32 %s98, 1
        %s203 = scalar_lea.sflag [#allocation5], %s202
        %s204 = sand.u32 %s98, 1
        %s205 = smul.addr %s204, 2
        %s206 = scalar_lea.vmem [#allocation8], %s205
        %v207 = vld [vmem:[%s178] sm:$0xff]
        %209 = vst [vmem:[#allocation1] ss:$2 sm:$0xff] %v207
        %v210 = vld.sshfl [vmem:[#allocation1] sm:$0xff pattern:$0x75316420]
        %v211 = vld.sshfl [vmem:[#allocation1 + $0x8] sm:$0xff pattern:$0x75316420]
        %vm214 = vcmask 1043456
        %v215 = vsel %vm214, %v210, -inf
        %v216 = vrot.slane %v215, 4
        %v217 = vmax.f32 %v215, %v216
        %v218 = vrot.slane %v217, 2
        %v219 = vmax.f32 %v217, %v218
        %v220 = vrot.slane %v219, 1
        %v221 = vmax.f32 %v219, %v220
        %v222 = vsel %vm214, %v211, -inf
        %v223 = vrot.slane %v222, 4
        %v224 = vmax.f32 %v222, %v223
        %v225 = vrot.slane %v224, 2
        %v226 = vmax.f32 %v224, %v225
        %v227 = vrot.slane %v226, 1
        %v228 = vmax.f32 %v226, %v227
        %229 = vst [vmem:[#allocation1] ss:$2 sm:$0xff] %v207
        %v230 = vld.sshfl [vmem:[#allocation1] sm:$0xff pattern:$0x75316420]
        %v231 = vld.sshfl [vmem:[#allocation1 + $0x8] sm:$0xff pattern:$0x75316420]
        %v234 = vsel %vm214, %v230, 0.0
        %v235 = vrot.slane %v234, 4
        %v236 = vadd.f32 %v234, %v235
        %v237 = vrot.slane %v236, 2
        %v238 = vadd.f32 %v236, %v237
        %v239 = vrot.slane %v238, 1
        %v240 = vadd.f32 %v238, %v239
        %v241 = vsel %vm214, %v231, 0.0
        %v242 = vrot.slane %v241, 4
        %v243 = vadd.f32 %v241, %v242
        %v244 = vrot.slane %v243, 2
        %v245 = vadd.f32 %v243, %v244
        %v246 = vrot.slane %v245, 1
        %v247 = vadd.f32 %v245, %v246
        %v248 = vrcp.pop 4.0
        %v249 = vmul.f32 4.0, %v248
        %v250 = vsub.f32 1.0, %v249
        %v251 = vmul.f32 %v248, %v250
        %v252 = vadd.f32 %v248, %v251
        %vm253 = vweird.f32 %v248
        %v254 = vsel %vm253, %v248, %v252
        %v255 = vmul.f32 %v240, %v254
        %v256 = vmul.f32 %v247, %v254
        %v257 = vld [vmem:[#allocation6] sm:$0xff]
        %v258 = vld [vmem:[#allocation6 + $0x8] sm:$0xff]
        %v259 = vld [vmem:[#allocation6 + $0x10] sm:$0xff]
        %v260 = vld [vmem:[#allocation6 + $0x18] sm:$0xff]
        %v261 = vld [vmem:[#allocation6 + $0x20] sm:$0xff]
        %v262 = vld [vmem:[#allocation6 + $0x28] sm:$0xff]
        %v263 = vld [vmem:[#allocation6 + $0x30] sm:$0xff]
        %v264 = vld [vmem:[#allocation6 + $0x38] sm:$0xff]
        %v265 = vld [vmem:[#allocation6 + $0x40] sm:$0xff]
        %v266 = vld [vmem:[#allocation6 + $0x48] sm:$0xff]
        %v267 = vld [vmem:[#allocation6 + $0x50] sm:$0xff]
        %v268 = vld [vmem:[#allocation6 + $0x58] sm:$0xff]
        %v269 = vld [vmem:[#allocation6 + $0x60] sm:$0xff]
        %v270 = vld [vmem:[#allocation6 + $0x68] sm:$0xff]
        %v271 = vld [vmem:[#allocation6 + $0x70] sm:$0xff]
        %v272 = vld [vmem:[#allocation6 + $0x78] sm:$0xff]
        %v273 = vld [vmem:[#allocation6 + $0x80] sm:$0xff]
        %v274 = vld [vmem:[#allocation6 + $0x88] sm:$0xff]
        %v275 = vld [vmem:[#allocation6 + $0x90] sm:$0xff]
        %v276 = vld [vmem:[#allocation6 + $0x98] sm:$0xff]
        %v277 = vld [vmem:[#allocation6 + $0xa0] sm:$0xff]
        %v278 = vld [vmem:[#allocation6 + $0xa8] sm:$0xff]
        %v279 = vld [vmem:[#allocation6 + $0xb0] sm:$0xff]
        %v280 = vld [vmem:[#allocation6 + $0xb8] sm:$0xff]
        %v281 = vld [vmem:[#allocation6 + $0xc0] sm:$0xff]
        %v282 = vld [vmem:[#allocation6 + $0xc8] sm:$0xff]
        %v283 = vld [vmem:[#allocation6 + $0xd0] sm:$0xff]
        %v284 = vld [vmem:[#allocation6 + $0xd8] sm:$0xff]
        %v285 = vld [vmem:[#allocation6 + $0xe0] sm:$0xff]
        %v286 = vld [vmem:[#allocation6 + $0xe8] sm:$0xff]
        %v287 = vld [vmem:[#allocation6 + $0xf0] sm:$0xff]
        %v288 = vld [vmem:[#allocation6 + $0xf8] sm:$0xff]
        %v289 = vld [vmem:[#allocation6 + $0x100] sm:$0xff]
        %v290 = vld [vmem:[#allocation6 + $0x108] sm:$0xff]
        %v291 = vld [vmem:[#allocation6 + $0x110] sm:$0xff]
        %v292 = vld [vmem:[#allocation6 + $0x118] sm:$0xff]
        %v293 = vld [vmem:[#allocation6 + $0x120] sm:$0xff]
        %v294 = vld [vmem:[#allocation6 + $0x128] sm:$0xff]
        %v295 = vld [vmem:[#allocation6 + $0x130] sm:$0xff]
        %v296 = vld [vmem:[#allocation6 + $0x138] sm:$0xff]
        %v297 = vld [vmem:[#allocation6 + $0x140] sm:$0xff]
        %v298 = vld [vmem:[#allocation6 + $0x148] sm:$0xff]
        %v299 = vld [vmem:[#allocation6 + $0x150] sm:$0xff]
        %v300 = vld [vmem:[#allocation6 + $0x158] sm:$0xff]
        %v301 = vld [vmem:[#allocation6 + $0x160] sm:$0xff]
        %v302 = vld [vmem:[#allocation6 + $0x168] sm:$0xff]
        %v303 = vld [vmem:[#allocation6 + $0x170] sm:$0xff]
        %v304 = vld [vmem:[#allocation6 + $0x178] sm:$0xff]
        %v305 = vld [vmem:[#allocation6 + $0x180] sm:$0xff]
        %v306 = vld [vmem:[#allocation6 + $0x188] sm:$0xff]
        %v307 = vld [vmem:[#allocation6 + $0x190] sm:$0xff]
        %v308 = vld [vmem:[#allocation6 + $0x198] sm:$0xff]
        %v309 = vld [vmem:[#allocation6 + $0x1a0] sm:$0xff]
        %v310 = vld [vmem:[#allocation6 + $0x1a8] sm:$0xff]
        %v311 = vld [vmem:[#allocation6 + $0x1b0] sm:$0xff]
        %v312 = vld [vmem:[#allocation6 + $0x1b8] sm:$0xff]
        %v313 = vld [vmem:[#allocation6 + $0x1c0] sm:$0xff]
        %v314 = vld [vmem:[#allocation6 + $0x1c8] sm:$0xff]
        %v315 = vld [vmem:[#allocation6 + $0x1d0] sm:$0xff]
        %v316 = vld [vmem:[#allocation6 + $0x1d8] sm:$0xff]
        %v317 = vld [vmem:[#allocation6 + $0x1e0] sm:$0xff]
        %v318 = vld [vmem:[#allocation6 + $0x1e8] sm:$0xff]
        %v319 = vld [vmem:[#allocation6 + $0x1f0] sm:$0xff]
        %v320 = vld [vmem:[#allocation6 + $0x1f8] sm:$0xff]
        %v321 = vld [vmem:[#allocation6 + $0x200] sm:$0xff]
        %v322 = vld [vmem:[#allocation6 + $0x208] sm:$0xff]
        %v323 = vld [vmem:[#allocation6 + $0x210] sm:$0xff]
        %v324 = vld [vmem:[#allocation6 + $0x218] sm:$0xff]
        %v325 = vld [vmem:[#allocation6 + $0x220] sm:$0xff]
        %v326 = vld [vmem:[#allocation6 + $0x228] sm:$0xff]
        %v327 = vld [vmem:[#allocation6 + $0x230] sm:$0xff]
        %v328 = vld [vmem:[#allocation6 + $0x238] sm:$0xff]
        %v329 = vld [vmem:[#allocation6 + $0x240] sm:$0xff]
        %v330 = vld [vmem:[#allocation6 + $0x248] sm:$0xff]
        %v331 = vld [vmem:[#allocation6 + $0x250] sm:$0xff]
        %v332 = vld [vmem:[#allocation6 + $0x258] sm:$0xff]
        %v333 = vld [vmem:[#allocation6 + $0x260] sm:$0xff]
        %v334 = vld [vmem:[#allocation6 + $0x268] sm:$0xff]
        %v335 = vld [vmem:[#allocation6 + $0x270] sm:$0xff]
        %v336 = vld [vmem:[#allocation6 + $0x278] sm:$0xff]
        %v337 = vld [vmem:[#allocation6 + $0x280] sm:$0xff]
        %v338 = vld [vmem:[#allocation6 + $0x288] sm:$0xff]
        %v339 = vld [vmem:[#allocation6 + $0x290] sm:$0xff]
        %v340 = vld [vmem:[#allocation6 + $0x298] sm:$0xff]
        %v341 = vld [vmem:[#allocation6 + $0x2a0] sm:$0xff]
        %v342 = vld [vmem:[#allocation6 + $0x2a8] sm:$0xff]
        %v343 = vld [vmem:[#allocation6 + $0x2b0] sm:$0xff]
        %v344 = vld [vmem:[#allocation6 + $0x2b8] sm:$0xff]
        %v345 = vld [vmem:[#allocation6 + $0x2c0] sm:$0xff]
        %v346 = vld [vmem:[#allocation6 + $0x2c8] sm:$0xff]
        %v347 = vld [vmem:[#allocation6 + $0x2d0] sm:$0xff]
        %v348 = vld [vmem:[#allocation6 + $0x2d8] sm:$0xff]
        %v349 = vld [vmem:[#allocation6 + $0x2e0] sm:$0xff]
        %v350 = vld [vmem:[#allocation6 + $0x2e8] sm:$0xff]
        %v351 = vld [vmem:[#allocation6 + $0x2f0] sm:$0xff]
        %v352 = vld [vmem:[#allocation6 + $0x2f8] sm:$0xff]
        %v353 = vld [vmem:[#allocation6 + $0x300] sm:$0xff]
        %v354 = vld [vmem:[#allocation6 + $0x308] sm:$0xff]
        %v355 = vld [vmem:[#allocation6 + $0x310] sm:$0xff]
        %v356 = vld [vmem:[#allocation6 + $0x318] sm:$0xff]
        %v357 = vld [vmem:[#allocation6 + $0x320] sm:$0xff]
        %v358 = vld [vmem:[#allocation6 + $0x328] sm:$0xff]
        %v359 = vld [vmem:[#allocation6 + $0x330] sm:$0xff]
        %v360 = vld [vmem:[#allocation6 + $0x338] sm:$0xff]
        %v361 = vld [vmem:[#allocation6 + $0x340] sm:$0xff]
        %v362 = vld [vmem:[#allocation6 + $0x348] sm:$0xff]
        %v363 = vld [vmem:[#allocation6 + $0x350] sm:$0xff]
        %v364 = vld [vmem:[#allocation6 + $0x358] sm:$0xff]
        %v365 = vld [vmem:[#allocation6 + $0x360] sm:$0xff]
        %v366 = vld [vmem:[#allocation6 + $0x368] sm:$0xff]
        %v367 = vld [vmem:[#allocation6 + $0x370] sm:$0xff]
        %v368 = vld [vmem:[#allocation6 + $0x378] sm:$0xff]
        %v369 = vld [vmem:[#allocation6 + $0x380] sm:$0xff]
        %v370 = vld [vmem:[#allocation6 + $0x388] sm:$0xff]
        %v371 = vld [vmem:[#allocation6 + $0x390] sm:$0xff]
        %v372 = vld [vmem:[#allocation6 + $0x398] sm:$0xff]
        %v373 = vld [vmem:[#allocation6 + $0x3a0] sm:$0xff]
        %v374 = vld [vmem:[#allocation6 + $0x3a8] sm:$0xff]
        %v375 = vld [vmem:[#allocation6 + $0x3b0] sm:$0xff]
        %v376 = vld [vmem:[#allocation6 + $0x3b8] sm:$0xff]
        %v377 = vld [vmem:[#allocation6 + $0x3c0] sm:$0xff]
        %v378 = vld [vmem:[#allocation6 + $0x3c8] sm:$0xff]
        %v379 = vld [vmem:[#allocation6 + $0x3d0] sm:$0xff]
        %v380 = vld [vmem:[#allocation6 + $0x3d8] sm:$0xff]
        %v381 = vld [vmem:[#allocation6 + $0x3e0] sm:$0xff]
        %v382 = vld [vmem:[#allocation6 + $0x3e8] sm:$0xff]
        %v383 = vld [vmem:[#allocation6 + $0x3f0] sm:$0xff]
        %v384 = vld [vmem:[#allocation6 + $0x3f8] sm:$0xff]
        %s385 = sld [smem:[#allocation2]]
        %v386 = vstv %s385
        %387 = vmatpush.msra.mxu0 %v287
        %388 = vmatpush.msra.mxu0 %v285
        %389 = vmatpush.msra.mxu0 %v283
        %390 = vmatpush.msra.mxu0 %v281
        %391 = vmatpush.msra.mxu0 %v279
        %392 = vmatpush.msra.mxu0 %v277
        %393 = vmatpush.msra.mxu0 %v275
        %394 = vmatpush.msra.mxu0 %v273
        %395 = vmatpush.msra.mxu0 %v271
        %396 = vmatpush.msra.mxu0 %v269
        %397 = vmatpush.msra.mxu0 %v267
        %398 = vmatpush.msra.mxu0 %v265
        %399 = vmatpush.msra.mxu0 %v263
        %400 = vmatpush.msra.mxu0 %v261
        %401 = vmatpush.msra.mxu0 %v259
        %402 = vmatpush.msra.mxu0 %v257
        %403 = vmatmul.f32.gmra.mxu0 %v221
        %v404 = vpop.f32.mrf.mxu0
        %v405 = vadd.f32 %v386, %v404
        %406 = vdwg.mxu0
        %407 = vmatpush.msra.mxu0 %v319
        %408 = vmatpush.msra.mxu0 %v317
        %409 = vmatpush.msra.mxu0 %v315
        %410 = vmatpush.msra.mxu0 %v313
        %411 = vmatpush.msra.mxu0 %v311
        %412 = vmatpush.msra.mxu0 %v309
        %413 = vmatpush.msra.mxu0 %v307
        %414 = vmatpush.msra.mxu0 %v305
        %415 = vmatpush.msra.mxu0 %v303
        %416 = vmatpush.msra.mxu0 %v301
        %417 = vmatpush.msra.mxu0 %v299
        %418 = vmatpush.msra.mxu0 %v297
        %419 = vmatpush.msra.mxu0 %v295
        %420 = vmatpush.msra.mxu0 %v293
        %421 = vmatpush.msra.mxu0 %v291
        %422 = vmatpush.msra.mxu0 %v289
        %423 = vmatmul.f32.gmra.mxu0 %v228
        %v424 = vpop.f32.mrf.mxu0
        %v425 = vadd.f32 %v405, %v424
        %426 = vdwg.mxu0
        %427 = vmatpush.msra.mxu0 %v351
        %428 = vmatpush.msra.mxu0 %v349
        %429 = vmatpush.msra.mxu0 %v347
        %430 = vmatpush.msra.mxu0 %v345
        %431 = vmatpush.msra.mxu0 %v343
        %432 = vmatpush.msra.mxu0 %v341
        %433 = vmatpush.msra.mxu0 %v339
        %434 = vmatpush.msra.mxu0 %v337
        %435 = vmatpush.msra.mxu0 %v335
        %436 = vmatpush.msra.mxu0 %v333
        %437 = vmatpush.msra.mxu0 %v331
        %438 = vmatpush.msra.mxu0 %v329
        %439 = vmatpush.msra.mxu0 %v327
        %440 = vmatpush.msra.mxu0 %v325
        %441 = vmatpush.msra.mxu0 %v323
        %442 = vmatpush.msra.mxu0 %v321
        %443 = vmatmul.f32.gmra.mxu0 %v255
        %v444 = vpop.f32.mrf.mxu0
        %v445 = vadd.f32 %v425, %v444
        %446 = vdwg.mxu0
        %447 = vmatpush.msra.mxu0 %v383
        %448 = vmatpush.msra.mxu0 %v381
        %449 = vmatpush.msra.mxu0 %v379
        %450 = vmatpush.msra.mxu0 %v377
        %451 = vmatpush.msra.mxu0 %v375
        %452 = vmatpush.msra.mxu0 %v373
        %453 = vmatpush.msra.mxu0 %v371
        %454 = vmatpush.msra.mxu0 %v369
        %455 = vmatpush.msra.mxu0 %v367
        %456 = vmatpush.msra.mxu0 %v365
        %457 = vmatpush.msra.mxu0 %v363
        %458 = vmatpush.msra.mxu0 %v361
        %459 = vmatpush.msra.mxu0 %v359
        %460 = vmatpush.msra.mxu0 %v357
        %461 = vmatpush.msra.mxu0 %v355
        %462 = vmatpush.msra.mxu0 %v353
        %463 = vmatmul.f32.gmra.mxu0 %v256
        %v464 = vpop.f32.mrf.mxu0
        %v465 = vadd.f32 %v445, %v464
        %466 = vdwg.mxu0
        %467 = vmatpush.msra.mxu0 %v288
        %468 = vmatpush.msra.mxu0 %v286
        %469 = vmatpush.msra.mxu0 %v284
        %470 = vmatpush.msra.mxu0 %v282
        %471 = vmatpush.msra.mxu0 %v280
        %472 = vmatpush.msra.mxu0 %v278
        %473 = vmatpush.msra.mxu0 %v276
        %474 = vmatpush.msra.mxu0 %v274
        %475 = vmatpush.msra.mxu0 %v272
        %476 = vmatpush.msra.mxu0 %v270
        %477 = vmatpush.msra.mxu0 %v268
        %478 = vmatpush.msra.mxu0 %v266
        %479 = vmatpush.msra.mxu0 %v264
        %480 = vmatpush.msra.mxu0 %v262
        %481 = vmatpush.msra.mxu0 %v260
        %482 = vmatpush.msra.mxu0 %v258
        %483 = vmatmul.f32.gmra.mxu0 %v221
        %v484 = vpop.f32.mrf.mxu0
        %v485 = vadd.f32 %v386, %v484
        %486 = vdwg.mxu0
        %487 = vmatpush.msra.mxu0 %v320
        %488 = vmatpush.msra.mxu0 %v318
        %489 = vmatpush.msra.mxu0 %v316
        %490 = vmatpush.msra.mxu0 %v314
        %491 = vmatpush.msra.mxu0 %v312
        %492 = vmatpush.msra.mxu0 %v310
        %493 = vmatpush.msra.mxu0 %v308
        %494 = vmatpush.msra.mxu0 %v306
        %495 = vmatpush.msra.mxu0 %v304
        %496 = vmatpush.msra.mxu0 %v302
        %497 = vmatpush.msra.mxu0 %v300
        %498 = vmatpush.msra.mxu0 %v298
        %499 = vmatpush.msra.mxu0 %v296
        %500 = vmatpush.msra.mxu0 %v294
        %501 = vmatpush.msra.mxu0 %v292
        %502 = vmatpush.msra.mxu0 %v290
        %503 = vmatmul.f32.gmra.mxu0 %v228
        %v504 = vpop.f32.mrf.mxu0
        %v505 = vadd.f32 %v485, %v504
        %506 = vdwg.mxu0
        %507 = vmatpush.msra.mxu0 %v352
        %508 = vmatpush.msra.mxu0 %v350
        %509 = vmatpush.msra.mxu0 %v348
        %510 = vmatpush.msra.mxu0 %v346
        %511 = vmatpush.msra.mxu0 %v344
        %512 = vmatpush.msra.mxu0 %v342
        %513 = vmatpush.msra.mxu0 %v340
        %514 = vmatpush.msra.mxu0 %v338
        %515 = vmatpush.msra.mxu0 %v336
        %516 = vmatpush.msra.mxu0 %v334
        %517 = vmatpush.msra.mxu0 %v332
        %518 = vmatpush.msra.mxu0 %v330
        %519 = vmatpush.msra.mxu0 %v328
        %520 = vmatpush.msra.mxu0 %v326
        %521 = vmatpush.msra.mxu0 %v324
        %522 = vmatpush.msra.mxu0 %v322
        %523 = vmatmul.f32.gmra.mxu0 %v255
        %v524 = vpop.f32.mrf.mxu0
        %v525 = vadd.f32 %v505, %v524
        %526 = vdwg.mxu0
        %527 = vmatpush.msra.mxu0 %v384
        %528 = vmatpush.msra.mxu0 %v382
        %529 = vmatpush.msra.mxu0 %v380
        %530 = vmatpush.msra.mxu0 %v378
        %531 = vmatpush.msra.mxu0 %v376
        %532 = vmatpush.msra.mxu0 %v374
        %533 = vmatpush.msra.mxu0 %v372
        %534 = vmatpush.msra.mxu0 %v370
        %535 = vmatpush.msra.mxu0 %v368
        %536 = vmatpush.msra.mxu0 %v366
        %537 = vmatpush.msra.mxu0 %v364
        %538 = vmatpush.msra.mxu0 %v362
        %539 = vmatpush.msra.mxu0 %v360
        %540 = vmatpush.msra.mxu0 %v358
        %541 = vmatpush.msra.mxu0 %v356
        %542 = vmatpush.msra.mxu0 %v354
        %543 = vmatmul.f32.gmra.mxu0 %v256
        %v544 = vpop.f32.mrf.mxu0
        %v545 = vadd.f32 %v525, %v544
        %546 = vdwg.mxu0
        %v547 = vsub.f32 0.0, %v465
        %v548 = vsub.f32 0.0, %v545
        %v549 = vmul.f32 %v547, 1.442695
        %v550 = vpow.pop %v549
        %v551 = vmul.f32 %v548, 1.442695
        %v552 = vpow.pop %v551
        %v553 = vadd.f32 %v550, 1.0
        %v554 = vadd.f32 %v552, 1.0
        %v555 = vrcp.pop %v553
        %v556 = vmul.f32 %v553, %v555
        %v557 = vsub.f32 1.0, %v556
        %v558 = vmul.f32 %v555, %v557
        %v559 = vadd.f32 %v555, %v558
        %vm560 = vweird.f32 %v553
        %vm561 = vweird.f32 %v555
        %vm562 = vmor %vm560, %vm561
        %v563 = vsel %vm562, %v555, %v559
        %v564 = vand.u32 2147483647, %v553
        %vm565 = vcmp.eq.f32.partialorder %v564, 8.507059e+37
        %v566 = vand.u32 %v553, 2147483648
        %v567 = vor.u32 1.1754944e-38, %v566
        %v568 = vsel %vm565, %v567, %v563
        %v569 = vmul.f32 1.0, %v568
        %v570 = vrcp.pop %v554
        %v571 = vmul.f32 %v554, %v570
        %v572 = vsub.f32 1.0, %v571
        %v573 = vmul.f32 %v570, %v572
        %v574 = vadd.f32 %v570, %v573
        %vm575 = vweird.f32 %v554
        %vm576 = vweird.f32 %v570
        %vm577 = vmor %vm575, %vm576
        %v578 = vsel %vm577, %v570, %v574
        %v579 = vand.u32 2147483647, %v554
        %vm580 = vcmp.eq.f32.partialorder %v579, 8.507059e+37
        %v581 = vand.u32 %v554, 2147483648
        %v582 = vor.u32 1.1754944e-38, %v581
        %v583 = vsel %vm580, %v582, %v578
        %v584 = vmul.f32 1.0, %v583
        %v587 = vrot.slane %v584, 7
        %vm588 = vcmask 1040384
        %v589 = vsel %vm588, %v569, %v587
        %v591 = vlaneseq
        %vm592 = vcmp.ge.s32.totalorder %v591, 0
        %vm593 = vcmp.lt.s32.totalorder %v591, 256
        %vm594 = vmand %vm592, %vm593
        %595 = vst.msk [vmem:[%s206] sm:$0x3] %vm594, %v589
        %s596 = sand.u32 %s98, 1
        %s597 = scalar_lea.sflag [#allocation5], %s596
        %s598 = sand.u32 %s98, 1
        %s599 = smul.addr %s598, 2
        %s600 = scalar_lea.vmem [#allocation8], %s599
        // Predicated region
        $region41: #{tpu_custom_call.1} parent=31 // pred_check
          %p601 = pneg %p108
        $region42: #{tpu_custom_call.1} parent=31 // pred_check_branch
          %603 = sbr.rel (%p601) target = $region44
        $region43: #{tpu_custom_call.1} parent=31 // pred_region
          %605 = vsyncadd %s597, 0
          %s606 = smul.addr %s22, 2
          %s607 = scalar_lea.hbm %s3, %s606
          %s609 = sshll.u32 %s600, 4
          %s610 = int_to_ptr.vmem [resolvable:$true] %s609
          %s611 = sshll.u32 %s607, 4
          %s612 = int_to_ptr.hbm [resolvable:$true] %s611
          %614 = dma.vmem_to_hbm [thread:$0]  %s610, 32, %s612, %s597
        $region44: #{tpu_custom_call.1} parent=31 // pred_fallthru
          _
      $region32: #{tpu_custom_call.1} parent=5 // pred_fallthru
        _
      %p615 = scmp.le.s32.totalorder 2, %s17
      // Predicated region
      $region45: #{tpu_custom_call.1} parent=5 // pred_check
        %p616 = pneg %p615
      $region46: #{tpu_custom_call.1} parent=5 // pred_check_branch
        %618 = sbr.rel (%p616) target = $region48
      $region47: #{tpu_custom_call.1} parent=5 // pred_region
        %s619 = ssub.s32 %s17, 2
        // Predicated region
        $region49: #{tpu_custom_call.1} parent=47 // pred_check
          %p620 = pneg %p114
        $region50: #{tpu_custom_call.1} parent=47 // pred_check_branch
          %622 = sbr.rel (%p620) target = $region52
        $region51: #{tpu_custom_call.1} parent=47 // pred_region
          %s623 = sand.u32 %s99, 1
          %s624 = scalar_lea.sflag [#allocation5], %s623
          %s625 = sand.u32 %s99, 1
          %s626 = smul.addr %s625, 2
          %s627 = scalar_lea.vmem [#allocation8], %s626
          %629 = dma.done %s624, 32
        $region52: #{tpu_custom_call.1} parent=47 // pred_fallthru
          _
      $region48: #{tpu_custom_call.1} parent=5 // pred_fallthru
        _
    $region6: #{tpu_custom_call.1} parent=1 // loop_footer
      %s21 = sadd.s32 1, %s17
    $region7: #{tpu_custom_call.1} parent=1 // loop_footer_branch
      %16 = sbr.rel target = $region3
    $region8: #{tpu_custom_call.1} parent=1 // loop_exit
      _
    %630 = vsyncpa [#allocation4], 1
    %s631 = scalar_lea.sflag [#allocation4], 1
    %632 = vsyncpa %s631, 1
    %633 = vsyncpa [#allocation7], 1
    %634 = vsyncpa [#allocation5], 1
    %s635 = scalar_lea.sflag [#allocation5], 1
    %636 = vsyncpa %s635, 1

</llo_original>
